<compile_context>
chip_gen: v6e
topology: v6e:2x2x1
jax: 0.10.0
libtpu: 0.0.40
codegen_flags: <defaults>
</compile_context>

<pallas_src>
import functools

import jax
import jax.numpy as jnp
from jax.experimental import pallas as pl
from jax.experimental.pallas import tpu as pltpu

_LANES = 128


def _round_up(x, m):
    return ((x + m - 1) // m) * m


def _mse_teacher_pointwise_kernel(sp_ref, sn_ref, lp_ref, ln_ref, out_ref,
                                  acc_ref, *, inv_two_n):
    i = pl.program_id(0)

    @pl.when(i == 0)
    def _init():
        acc_ref[...] = jnp.zeros_like(acc_ref)

    # Fused pos/neg squared differences, accumulated per-lane (VPU only).
    dp = sp_ref[...] - lp_ref[...]
    dn = sn_ref[...] - ln_ref[...]
    acc_ref[...] += dp * dp + dn * dn

    @pl.when(i == pl.num_programs(0) - 1)
    def _finalize():
        # Single cross-lane reduction at the very end.
        # (sum_pos/N + sum_neg/N) / 2 == (sum_pos + sum_neg) / (2N)
        out_ref[0, 0] = jnp.sum(acc_ref[...]) * inv_two_n


def _mse_teacher_pointwise_ref(scores_pos, scores_neg, label_pos, label_neg):
    sp, sn, lp, ln = (jnp.asarray(x, jnp.float32)
                      for x in (scores_pos, scores_neg, label_pos, label_neg))
    return (jnp.mean((sp - lp) ** 2) + jnp.mean((sn - ln) ** 2)) * 0.5


def _mse_teacher_pointwise_pallas(scores_pos, scores_neg, label_pos, label_neg,
                                  *, block_rows=512):
    n = scores_pos.size
    rows = pl.cdiv(n, _LANES)
    # Tile rows: multiple of 8 sublanes, capped at block_rows (itself a
    # multiple of 8). Small inputs get a single shrunken tile instead of a
    # huge padded one.
    block_rows_eff = min(block_rows, _round_up(rows, 8))
    padded_rows = _round_up(rows, block_rows_eff)
    padded_n = padded_rows * _LANES
    grid = (padded_rows // block_rows_eff,)

    def prep(x):
        x = jnp.asarray(x, jnp.float32).reshape(-1)
        if padded_n != n:
            x = jnp.pad(x, (0, padded_n - n))  # zero tail -> zero contribution
        return x.reshape(padded_rows, _LANES)

    sp, sn, lp, ln = (prep(x)
                      for x in (scores_pos, scores_neg, label_pos, label_neg))

    tile_spec = pl.BlockSpec((block_rows_eff, _LANES), lambda i: (i, 0))
    kernel = functools.partial(_mse_teacher_pointwise_kernel,
                               inv_two_n=1.0 / (2.0 * n))

    out = pl.pallas_call(
        kernel,
        out_shape=jax.ShapeDtypeStruct((1, 1), jnp.float32),
        grid_spec=pltpu.PrefetchScalarGridSpec(
            num_scalar_prefetch=0,
            grid=grid,
            in_specs=[tile_spec, tile_spec, tile_spec, tile_spec],
            out_specs=pl.BlockSpec((1, 1), lambda i: (0, 0),
                                   memory_space=pltpu.MemorySpace.SMEM),
            scratch_shapes=[pltpu.VMEM((block_rows_eff, _LANES), jnp.float32)],
        ),
        compiler_params=pltpu.CompilerParams(
            dimension_semantics=("arbitrary",)),
    )(sp, sn, lp, ln)
    return out[0, 0]


def mse_teacher_pointwise(scores_pos, scores_neg, label_pos, label_neg,
                          *, block_rows=512, min_pallas_elems=1024):
    """Pallas equivalent of MSETeacherPointwise.forward. Returns a scalar."""
    assert scores_pos.shape == label_pos.shape
    assert scores_neg.shape == label_neg.shape
    assert scores_pos.shape == scores_neg.shape  # pointwise teacher: same batch

    n = scores_pos.size
    if n < min_pallas_elems:
        # Tiny batch: kernel launch overhead dominates; plain JAX is faster.
        return _mse_teacher_pointwise_ref(scores_pos, scores_neg,
                                          label_pos, label_neg)
    return _mse_teacher_pointwise_pallas(scores_pos, scores_neg,
                                         label_pos, label_neg,
                                         block_rows=block_rows)


if __name__ == "__main__":
    key = jax.random.PRNGKey(0)
    k1, k2, k3, k4 = jax.random.split(key, 4)

    # Moderately sized pointwise batch; 4000 % 128 != 0 so the zero-padded
    # tail path is exercised. block_rows=8 forces a multi-tile grid (4 steps)
    # even at this small size, exercising the accumulate/finalize pipeline.
    batch = 4000
    scores_pos = jax.random.normal(k1, (batch,), jnp.float32)
    scores_neg = jax.random.normal(k2, (batch,), jnp.float32)
    label_pos = jax.random.normal(k3, (batch,), jnp.float32)
    label_neg = jax.random.normal(k4, (batch,), jnp.float32)

    loss = mse_teacher_pointwise(scores_pos, scores_neg, label_pos, label_neg,
                                 block_rows=8)
    loss = jax.block_until_ready(loss)

    ref = _mse_teacher_pointwise_ref(scores_pos, scores_neg,
                                     label_pos, label_neg)
    assert jnp.allclose(loss, ref, rtol=1e-5, atol=1e-6), (loss, ref)

    # Tiny batch goes through the plain-JAX fast path; semantics identical.
    kb1, kb2, kb3, kb4 = jax.random.split(jax.random.PRNGKey(1), 4)
    sp_s = jax.random.normal(kb1, (8,), jnp.float32)
    sn_s = jax.random.normal(kb2, (8,), jnp.float32)
    lp_s = jax.random.normal(kb3, (8,), jnp.float32)
    ln_s = jax.random.normal(kb4, (8,), jnp.float32)
    loss_s = mse_teacher_pointwise(sp_s, sn_s, lp_s, ln_s)
    ref_s = _mse_teacher_pointwise_ref(sp_s, sn_s, lp_s, ln_s)
    assert jnp.allclose(loss_s, ref_s, rtol=1e-5, atol=1e-6), (loss_s, ref_s)

    print("KERNEL_OK")
</pallas_src>

<mosaic_0001>
module attributes {stable_mosaic.version = 11 : i64} {
  func.func @_mse_teacher_pointwise_kernel(%arg0: i32, %arg1: memref<8x128xf32, #tpu.memory_space<vmem>>, %arg2: memref<8x128xf32, #tpu.memory_space<vmem>>, %arg3: memref<8x128xf32, #tpu.memory_space<vmem>>, %arg4: memref<8x128xf32, #tpu.memory_space<vmem>>, %arg5: memref<1x1xf32, #tpu.memory_space<smem>>, %arg6: memref<8x128xf32, #tpu.memory_space<vmem>>) attributes {dimension_semantics = [#tpu.dimension_semantics<arbitrary>], iteration_bounds = array<i64: 4>, scalar_prefetch = 0 : i64, scratch_operands = 1 : i64, tpu.core_type = #tpu.core_type<tc>, window_params = [{transform_indices = @transform_0, window_bounds = array<i64: 8, 128>}, {transform_indices = @transform_1, window_bounds = array<i64: 8, 128>}, {transform_indices = @transform_2, window_bounds = array<i64: 8, 128>}, {transform_indices = @transform_3, window_bounds = array<i64: 8, 128>}, {transform_indices = @transform_4, window_bounds = array<i64: 1, 1>}]} {
    %c0_i32 = arith.constant 0 : i32
    %0 = arith.cmpi eq, %arg0, %c0_i32 : i32
    %1 = arith.extui %0 : i1 to i32
    %c0_i32_0 = arith.constant 0 : i32
    %2 = arith.cmpi ne, %1, %c0_i32_0 : i32
    scf.if %2 {
      %cst = arith.constant 0.000000e+00 : f32
      %18 = vector.broadcast %cst : f32 to vector<8x128xf32>
      %c0_13 = arith.constant 0 : index
      %c0_14 = arith.constant 0 : index
      %19 = vector.load %arg6[%c0_13, %c0_14] : memref<8x128xf32, #tpu.memory_space<vmem>>, vector<8x128xf32>
      tpu.vector_store %arg6[%c0_13, %c0_14], %18 {strides = array<i32>} : memref<8x128xf32, #tpu.memory_space<vmem>>, vector<8x128xf32>,
    } else {
    }
    %c0 = arith.constant 0 : index
    %c0_1 = arith.constant 0 : index
    %3 = vector.load %arg1[%c0, %c0_1] : memref<8x128xf32, #tpu.memory_space<vmem>>, vector<8x128xf32>
    %c0_2 = arith.constant 0 : index
    %c0_3 = arith.constant 0 : index
    %4 = vector.load %arg3[%c0_2, %c0_3] : memref<8x128xf32, #tpu.memory_space<vmem>>, vector<8x128xf32>
    %5 = arith.subf %3, %4 : vector<8x128xf32>
    %c0_4 = arith.constant 0 : index
    %c0_5 = arith.constant 0 : index
    %6 = vector.load %arg2[%c0_4, %c0_5] : memref<8x128xf32, #tpu.memory_space<vmem>>, vector<8x128xf32>
    %c0_6 = arith.constant 0 : index
    %c0_7 = arith.constant 0 : index
    %7 = vector.load %arg4[%c0_6, %c0_7] : memref<8x128xf32, #tpu.memory_space<vmem>>, vector<8x128xf32>
    %8 = arith.subf %6, %7 : vector<8x128xf32>
    %c0_8 = arith.constant 0 : index
    %c0_9 = arith.constant 0 : index
    %9 = vector.load %arg6[%c0_8, %c0_9] : memref<8x128xf32, #tpu.memory_space<vmem>>, vector<8x128xf32>
    %10 = arith.mulf %5, %5 : vector<8x128xf32>
    %11 = arith.mulf %8, %8 : vector<8x128xf32>
    %12 = arith.addf %10, %11 : vector<8x128xf32>
    %13 = arith.addf %9, %12 : vector<8x128xf32>
    %c0_10 = arith.constant 0 : index
    %c0_11 = arith.constant 0 : index
    %14 = vector.load %arg6[%c0_10, %c0_11] : memref<8x128xf32, #tpu.memory_space<vmem>>, vector<8x128xf32>
    tpu.vector_store %arg6[%c0_10, %c0_11], %13 {strides = array<i32>} : memref<8x128xf32, #tpu.memory_space<vmem>>, vector<8x128xf32>,
    %c3_i32 = arith.constant 3 : i32
    %15 = arith.cmpi eq, %arg0, %c3_i32 : i32
    %16 = arith.extui %15 : i1 to i32
    %c0_i32_12 = arith.constant 0 : i32
    %17 = arith.cmpi ne, %16, %c0_i32_12 : i32
    scf.if %17 {
      %c0_13 = arith.constant 0 : index
      %c0_14 = arith.constant 0 : index
      %18 = vector.load %arg6[%c0_13, %c0_14] : memref<8x128xf32, #tpu.memory_space<vmem>>, vector<8x128xf32>
      %19 = vector.shape_cast %18 : vector<8x128xf32> to vector<1x8x128xf32>
      %cst = arith.constant dense<0.000000e+00> : vector<1xf32>
      %20 = vector.multi_reduction <add>, %19, %cst [1, 2] : vector<1x8x128xf32> to vector<1xf32>
      %21 = vector.shape_cast %20 : vector<1xf32> to vector<1x1x1xf32>
      %22 = vector.extract %21[0, 0, 0] : f32 from vector<1x1x1xf32>
      %cst_15 = arith.constant 1.250000e-04 : f32
      %23 = arith.mulf %22, %cst_15 : f32
      %c0_16 = arith.constant 0 : index
      %c0_17 = arith.constant 0 : index
      %24 = memref.load %arg5[%c0_16, %c0_17] : memref<1x1xf32, #tpu.memory_space<smem>>
      memref.store %23, %arg5[%c0_16, %c0_17] : memref<1x1xf32, #tpu.memory_space<smem>>
    } else {
    }
    return
  }
  func.func @transform_0(%arg0: i32) -> (i32, i32) {
    %c0_i32 = arith.constant 0 : i32
    %c0_i32_0 = arith.constant 0 : i32
    return %arg0, %c0_i32 : i32, i32
  }
  func.func @transform_1(%arg0: i32) -> (i32, i32) {
    %c0_i32 = arith.constant 0 : i32
    %c0_i32_0 = arith.constant 0 : i32
    return %arg0, %c0_i32 : i32, i32
  }
  func.func @transform_2(%arg0: i32) -> (i32, i32) {
    %c0_i32 = arith.constant 0 : i32
    %c0_i32_0 = arith.constant 0 : i32
    return %arg0, %c0_i32 : i32, i32
  }
  func.func @transform_3(%arg0: i32) -> (i32, i32) {
    %c0_i32 = arith.constant 0 : i32
    %c0_i32_0 = arith.constant 0 : i32
    return %arg0, %c0_i32 : i32, i32
  }
  func.func @transform_4(%arg0: i32) -> (i32, i32) {
    %c0_i32 = arith.constant 0 : i32
    %c0_i32_0 = arith.constant 0 : i32
    %c0_i32_1 = arith.constant 0 : i32
    return %c0_i32, %c0_i32_0 : i32, i32
  }
}

</mosaic_0001>

<llo_original>
// kernel: tpu_custom_call.1
$region0: #{tpu_custom_call.1}
  #allocation0 [shape = 'u32[]', space=smem, size = 0x4, offset = 0x4, fixed_abs, tag = 'smem constant byte address 0x4 - core index']
  #allocation1 [shape = 'u32[144,128]{1,0:T(1,128)}', space=vmem, size = 0x12000, scoped, tag = 'internal scratch']
  #allocation2 [shape = 'f32[8,128]{1,0:T(8,128)}', space=vmem, size = 0x1000, scoped, tag = 'scratch operand']
  %s0 = inlined_call_operand.hbm [shape: f32[32,128], index: 0, kind: input, shape index: {}]
  %s1 = inlined_call_operand.hbm [shape: f32[32,128], index: 1, kind: input, shape index: {}]
  %s2 = inlined_call_operand.hbm [shape: f32[32,128], index: 2, kind: input, shape index: {}]
  %s3 = inlined_call_operand.hbm [shape: f32[32,128], index: 3, kind: input, shape index: {}]
  %s4 = inlined_call_operand.hbm [shape: f32[1,1], index: 4, kind: output, shape index: {}]
  %s5 = sld [smem:[#allocation0]]
  $region73: #{tpu_custom_call.1} parent=0
    _
  %s7 = ssub.s32 1, %s5
  %s8 = scalar_select 0, %s7, %s5
  $region1: #{tpu_custom_call.1} parent=0
    #allocation3 [shape = 'u8[8192]{0}', space=vmem, size = 0x2000, scoped, tag = 'input window, operand 0']
    #allocation4 [shape = 's32[2]{0}', space=sflag, size = 0x8, scoped, tag = 'scoped memory for tpu_custom_call.1']
    #allocation5 [shape = 's32[2]{0}', space=sflag, size = 0x8, scoped, tag = 'scoped memory for tpu_custom_call.1']
    #allocation6 [shape = 'u8[8192]{0}', space=vmem, size = 0x2000, scoped, tag = 'input window, operand 1']
    #allocation7 [shape = 's32[2]{0}', space=sflag, size = 0x8, scoped, tag = 'scoped memory for tpu_custom_call.1']
    #allocation8 [shape = 'u8[8192]{0}', space=vmem, size = 0x2000, scoped, tag = 'input window, operand 2']
    #allocation9 [shape = 'u8[8192]{0}', space=vmem, size = 0x2000, scoped, tag = 'input window, operand 3']
    #allocation10 [shape = 's32[2]{0}', space=sflag, size = 0x8, scoped, tag = 'scoped memory for tpu_custom_call.1']
    #allocation11 [shape = 'u8[512]{0}', space=smem, size = 0x200, scoped, tag = 'output window, operand 0, single buffered']
    %9 = vsyncpa [#allocation4], 0
    %s10 = scalar_lea.sflag [#allocation4], 1
    %11 = vsyncpa %s10, 0
    %12 = vsyncpa [#allocation7], 0
    %s13 = scalar_lea.sflag [#allocation7], 1
    %14 = vsyncpa %s13, 0
    %15 = vsyncpa [#allocation10], 0
    %s16 = scalar_lea.sflag [#allocation10], 1
    %17 = vsyncpa %s16, 0
    %18 = vsyncpa [#allocation5], 0
    loop: start=0, step=1, limit=6
    $region2: #{tpu_custom_call.1} parent=1 // loop_pre_header
      _
    $region3: #{tpu_custom_call.1} parent=1 // loop_header
      %s20 = sphi 0, %s24
      %p21 = scmp.ge.s32.totalorder %s20, 6
      %s30 = sphi 0, %s32
      %s33 = sphi 0, %s30
      %s34 = sphi 0, %s33
      %s50 = sphi 0, %s34
      %s56 = sphi 0, %s58
      %s59 = sphi 0, %s56
      %s60 = sphi 0, %s59
      %s76 = sphi 0, %s60
      %s82 = sphi 0, %s84
      %s85 = sphi 0, %s82
      %s86 = sphi 0, %s85
      %s102 = sphi 0, %s86
      %s108 = sphi 0, %s110
      %s111 = sphi 0, %s108
      %s112 = sphi 0, %s111
      %s128 = sphi 0, %s112
      %s132 = sphi 0, %s132
      %s134 = sphi 0, %s132
      %s135 = sphi 0, %s134
      %s149 = sphi 0, %s135
    $region4: #{tpu_custom_call.1} parent=1 // loop_header_branch
      %23 = sbr.rel (%p21) target = $region8
    $region5: #{tpu_custom_call.1} parent=1 // loop_body
      %s25 = ssub.s32 %s20, 1
      %s26 = ssub.s32 %s20, 2
      %s27 = sadd.s32 %s20, 1
      %s28 = ssub.s32 %s20, %s27
      %p29 = scmp.eq.s32.totalorder %s28, 0
      %s31 = sadd.s32 %s30, 1
      %s32 = scalar_select %p29, %s30, %s31
      %p35 = pneg %p29
      %p36 = scmp.eq.s32.totalorder %s20, 3
      %p37 = por %p35, %p36
      %p38 = scmp.ne.s32.totalorder %s30, %s33
      %p39 = scmp.eq.s32.totalorder %s20, 0
      %p40 = por %p38, %p39
      %p41 = scmp.ne.s32.totalorder %s30, %s33
      %p42 = scmp.eq.s32.totalorder %s25, 3
      %p43 = por %p41, %p42
      %p44 = scmp.ne.s32.totalorder %s33, %s34
      %p45 = scmp.eq.s32.totalorder %s25, 0
      %p46 = por %p44, %p45
      %p47 = scmp.ne.s32.totalorder %s33, %s34
      %p48 = scmp.eq.s32.totalorder %s26, 3
      %p49 = por %p47, %p48
      %p51 = scmp.ne.s32.totalorder %s34, %s50
      %p52 = scmp.eq.s32.totalorder %s26, 0
      %p53 = por %p51, %p52
      %s54 = ssub.s32 %s20, %s27
      %p55 = scmp.eq.s32.totalorder %s54, 0
      %s57 = sadd.s32 %s56, 1
      %s58 = scalar_select %p55, %s56, %s57
      %p61 = pneg %p55
      %p62 = scmp.eq.s32.totalorder %s20, 3
      %p63 = por %p61, %p62
      %p64 = scmp.ne.s32.totalorder %s56, %s59
      %p65 = scmp.eq.s32.totalorder %s20, 0
      %p66 = por %p64, %p65
      %p67 = scmp.ne.s32.totalorder %s56, %s59
      %p68 = scmp.eq.s32.totalorder %s25, 3
      %p69 = por %p67, %p68
      %p70 = scmp.ne.s32.totalorder %s59, %s60
      %p71 = scmp.eq.s32.totalorder %s25, 0
      %p72 = por %p70, %p71
      %p73 = scmp.ne.s32.totalorder %s59, %s60
      %p74 = scmp.eq.s32.totalorder %s26, 3
      %p75 = por %p73, %p74
      %p77 = scmp.ne.s32.totalorder %s60, %s76
      %p78 = scmp.eq.s32.totalorder %s26, 0
      %p79 = por %p77, %p78
      %s80 = ssub.s32 %s20, %s27
      %p81 = scmp.eq.s32.totalorder %s80, 0
      %s83 = sadd.s32 %s82, 1
      %s84 = scalar_select %p81, %s82, %s83
      %p87 = pneg %p81
      %p88 = scmp.eq.s32.totalorder %s20, 3
      %p89 = por %p87, %p88
      %p90 = scmp.ne.s32.totalorder %s82, %s85
      %p91 = scmp.eq.s32.totalorder %s20, 0
      %p92 = por %p90, %p91
      %p93 = scmp.ne.s32.totalorder %s82, %s85
      %p94 = scmp.eq.s32.totalorder %s25, 3
      %p95 = por %p93, %p94
      %p96 = scmp.ne.s32.totalorder %s85, %s86
      %p97 = scmp.eq.s32.totalorder %s25, 0
      %p98 = por %p96, %p97
      %p99 = scmp.ne.s32.totalorder %s85, %s86
      %p100 = scmp.eq.s32.totalorder %s26, 3
      %p101 = por %p99, %p100
      %p103 = scmp.ne.s32.totalorder %s86, %s102
      %p104 = scmp.eq.s32.totalorder %s26, 0
      %p105 = por %p103, %p104
      %s106 = ssub.s32 %s20, %s27
      %p107 = scmp.eq.s32.totalorder %s106, 0
      %s109 = sadd.s32 %s108, 1
      %s110 = scalar_select %p107, %s108, %s109
      %p113 = pneg %p107
      %p114 = scmp.eq.s32.totalorder %s20, 3
      %p115 = por %p113, %p114
      %p116 = scmp.ne.s32.totalorder %s108, %s111
      %p117 = scmp.eq.s32.totalorder %s20, 0
      %p118 = por %p116, %p117
      %p119 = scmp.ne.s32.totalorder %s108, %s111
      %p120 = scmp.eq.s32.totalorder %s25, 3
      %p121 = por %p119, %p120
      %p122 = scmp.ne.s32.totalorder %s111, %s112
      %p123 = scmp.eq.s32.totalorder %s25, 0
      %p124 = por %p122, %p123
      %p125 = scmp.ne.s32.totalorder %s111, %s112
      %p126 = scmp.eq.s32.totalorder %s26, 3
      %p127 = por %p125, %p126
      %p129 = scmp.ne.s32.totalorder %s112, %s128
      %p130 = scmp.eq.s32.totalorder %s26, 0
      %p131 = por %p129, %p130
      %s133 = sadd.s32 %s132, 1
      %p136 = scmp.eq.s32.totalorder %s20, 3
      %p137 = scmp.ne.s32.totalorder %s132, %s134
      %p138 = scmp.eq.s32.totalorder %s20, 0
      %p139 = por %p137, %p138
      %p140 = scmp.ne.s32.totalorder %s132, %s134
      %p141 = scmp.eq.s32.totalorder %s25, 3
      %p142 = por %p140, %p141
      %p143 = scmp.ne.s32.totalorder %s134, %s135
      %p144 = scmp.eq.s32.totalorder %s25, 0
      %p145 = por %p143, %p144
      %p146 = scmp.ne.s32.totalorder %s134, %s135
      %p147 = scmp.eq.s32.totalorder %s26, 3
      %p148 = por %p146, %p147
      %p150 = scmp.ne.s32.totalorder %s135, %s149
      %p151 = scmp.eq.s32.totalorder %s26, 0
      %p152 = por %p150, %p151
      %p153 = scmp.le.s32.totalorder 1, %s20
      %p154 = scmp.lt.s32.totalorder %s20, 5
      %p155 = pnand %p153, %p154
      %p156 = pneg %p155
      // Predicated region
      $region9: #{tpu_custom_call.1} parent=5 // pred_check
        _
      $region10: #{tpu_custom_call.1} parent=5 // pred_check_branch
        %158 = sbr.rel (%p155) target = $region12
      $region11: #{tpu_custom_call.1} parent=5 // pred_region
        %s159 = ssub.s32 %s20, 1
      $region12: #{tpu_custom_call.1} parent=5 // pred_fallthru
        _
      %p160 = scmp.lt.s32.totalorder %s20, 4
      // Predicated region
      $region13: #{tpu_custom_call.1} parent=5 // pred_check
        %p161 = pneg %p160
      $region14: #{tpu_custom_call.1} parent=5 // pred_check_branch
        %163 = sbr.rel (%p161) target = $region16
      $region15: #{tpu_custom_call.1} parent=5 // pred_region
        // Predicated region
        $region17: #{tpu_custom_call.1} parent=15 // pred_check
          %p164 = pneg %p40
        $region18: #{tpu_custom_call.1} parent=15 // pred_check_branch
          %166 = sbr.rel (%p164) target = $region20
        $region19: #{tpu_custom_call.1} parent=15 // pred_region
          %s167 = sand.u32 %s30, 1
          %s168 = scalar_lea.sflag [#allocation4], %s167
          %s169 = sand.u32 %s30, 1
          %s170 = smul.addr %s169, 8
          %s171 = scalar_lea.vmem [#allocation3], %s170
          %s173 = ssub.s32 128, 128
          %174 = vsyncadd %s168, %s173
          %s175 = smul.addr %s20, 128
          %s176 = scalar_lea.hbm %s0, %s175
          %s178 = sshll.u32 %s171, 4
          %s179 = int_to_ptr.vmem [resolvable:$true] %s178
          %181 = dma.hbm_to_vmem [thread:$0]  %s176, 128, %s179, %s168
        $region20: #{tpu_custom_call.1} parent=15 // pred_fallthru
          _
        // Predicated region
        $region21: #{tpu_custom_call.1} parent=15 // pred_check
          %p182 = pneg %p66
        $region22: #{tpu_custom_call.1} parent=15 // pred_check_branch
          %184 = sbr.rel (%p182) target = $region24
        $region23: #{tpu_custom_call.1} parent=15 // pred_region
          %s185 = sand.u32 %s20, 1
          %s186 = scalar_lea.sflag [#allocation7], %s185
          %s187 = sand.u32 %s56, 1
          %s188 = smul.addr %s187, 8
          %s189 = scalar_lea.vmem [#allocation6], %s188
          %s191 = ssub.s32 128, 128
          %192 = vsyncadd %s186, %s191
          %s193 = smul.addr %s20, 128
          %s194 = scalar_lea.hbm %s1, %s193
          %s196 = sshll.u32 %s189, 4
          %s197 = int_to_ptr.vmem [resolvable:$true] %s196
          %199 = dma.hbm_to_vmem [thread:$0]  %s194, 128, %s197, %s186
        $region24: #{tpu_custom_call.1} parent=15 // pred_fallthru
          _
        // Predicated region
        $region25: #{tpu_custom_call.1} parent=15 // pred_check
          %p200 = pneg %p92
        $region26: #{tpu_custom_call.1} parent=15 // pred_check_branch
          %202 = sbr.rel (%p200) target = $region28
        $region27: #{tpu_custom_call.1} parent=15 // pred_region
          %s203 = sand.u32 %s20, 1
          %s204 = scalar_lea.sflag [#allocation7], %s203
          %s205 = sand.u32 %s82, 1
          %s206 = smul.addr %s205, 8
          %s207 = scalar_lea.vmem [#allocation8], %s206
          %s209 = ssub.s32 128, 128
          %210 = vsyncadd %s204, %s209
          %s211 = smul.addr %s20, 128
          %s212 = scalar_lea.hbm %s2, %s211
          %s214 = sshll.u32 %s207, 4
          %s215 = int_to_ptr.vmem [resolvable:$true] %s214
          %217 = dma.hbm_to_vmem [thread:$0]  %s212, 128, %s215, %s204
        $region28: #{tpu_custom_call.1} parent=15 // pred_fallthru
          _
        // Predicated region
        $region29: #{tpu_custom_call.1} parent=15 // pred_check
          %p218 = pneg %p118
        $region30: #{tpu_custom_call.1} parent=15 // pred_check_branch
          %220 = sbr.rel (%p218) target = $region32
        $region31: #{tpu_custom_call.1} parent=15 // pred_region
          %s221 = sand.u32 %s108, 1
          %s222 = scalar_lea.sflag [#allocation10], %s221
          %s223 = sand.u32 %s108, 1
          %s224 = smul.addr %s223, 8
          %s225 = scalar_lea.vmem [#allocation9], %s224
          %s227 = ssub.s32 128, 128
          %228 = vsyncadd %s222, %s227
          %s229 = smul.addr %s20, 128
          %s230 = scalar_lea.hbm %s3, %s229
          %s232 = sshll.u32 %s225, 4
          %s233 = int_to_ptr.vmem [resolvable:$true] %s232
          %235 = dma.hbm_to_vmem [thread:$0]  %s230, 128, %s233, %s222
        $region32: #{tpu_custom_call.1} parent=15 // pred_fallthru
          _
      $region16: #{tpu_custom_call.1} parent=5 // pred_fallthru
        _
      %p236 = scmp.le.s32.totalorder 1, %s20
      %p237 = scmp.lt.s32.totalorder %s20, 5
      %p238 = pnand %p236, %p237
      %p239 = pneg %p238
      // Predicated region
      $region33: #{tpu_custom_call.1} parent=5 // pred_check
        _
      $region34: #{tpu_custom_call.1} parent=5 // pred_check_branch
        %241 = sbr.rel (%p238) target = $region36
      $region35: #{tpu_custom_call.1} parent=5 // pred_region
        %s242 = ssub.s32 %s20, 1
        %s243 = sand.u32 %s33, 1
        %s244 = scalar_lea.sflag [#allocation4], %s243
        %s245 = sand.u32 %s33, 1
        %s246 = smul.addr %s245, 8
        %s247 = scalar_lea.vmem [#allocation3], %s246
        // Predicated region
        $region37: #{tpu_custom_call.1} parent=35 // pred_check
          %p248 = pneg %p46
        $region38: #{tpu_custom_call.1} parent=35 // pred_check_branch
          %250 = sbr.rel (%p248) target = $region40
        $region39: #{tpu_custom_call.1} parent=35 // pred_region
          %251 = dma.done %s244, 128
        $region40: #{tpu_custom_call.1} parent=35 // pred_fallthru
          _
        %s252 = sand.u32 %s25, 1
        %s253 = scalar_lea.sflag [#allocation7], %s252
        %s254 = sand.u32 %s59, 1
        %s255 = smul.addr %s254, 8
        %s256 = scalar_lea.vmem [#allocation6], %s255
        // Predicated region
        $region41: #{tpu_custom_call.1} parent=35 // pred_check
          %p257 = pneg %p72
        $region42: #{tpu_custom_call.1} parent=35 // pred_check_branch
          %259 = sbr.rel (%p257) target = $region44
        $region43: #{tpu_custom_call.1} parent=35 // pred_region
          %260 = dma.done %s253, 128
        $region44: #{tpu_custom_call.1} parent=35 // pred_fallthru
          _
        %s261 = sand.u32 %s25, 1
        %s262 = scalar_lea.sflag [#allocation7], %s261
        %s263 = sand.u32 %s85, 1
        %s264 = smul.addr %s263, 8
        %s265 = scalar_lea.vmem [#allocation8], %s264
        // Predicated region
        $region45: #{tpu_custom_call.1} parent=35 // pred_check
          %p266 = pneg %p98
        $region46: #{tpu_custom_call.1} parent=35 // pred_check_branch
          %268 = sbr.rel (%p266) target = $region48
        $region47: #{tpu_custom_call.1} parent=35 // pred_region
          %269 = dma.done %s262, 128
        $region48: #{tpu_custom_call.1} parent=35 // pred_fallthru
          _
        %s270 = sand.u32 %s111, 1
        %s271 = scalar_lea.sflag [#allocation10], %s270
        %s272 = sand.u32 %s111, 1
        %s273 = smul.addr %s272, 8
        %s274 = scalar_lea.vmem [#allocation9], %s273
        // Predicated region
        $region49: #{tpu_custom_call.1} parent=35 // pred_check
          %p275 = pneg %p124
        $region50: #{tpu_custom_call.1} parent=35 // pred_check_branch
          %277 = sbr.rel (%p275) target = $region52
        $region51: #{tpu_custom_call.1} parent=35 // pred_region
          %278 = dma.done %s271, 128
        $region52: #{tpu_custom_call.1} parent=35 // pred_fallthru
          _
        %s279 = sand.u32 %s33, 1
        %s280 = scalar_lea.sflag [#allocation4], %s279
        %s281 = sand.u32 %s33, 1
        %s282 = smul.addr %s281, 8
        %s283 = scalar_lea.vmem [#allocation3], %s282
        %p284 = pneg %p46
        %p285 = pneg %p43
        %s286 = sand.u32 %s25, 1
        %s287 = scalar_lea.sflag [#allocation7], %s286
        %s288 = sand.u32 %s59, 1
        %s289 = smul.addr %s288, 8
        %s290 = scalar_lea.vmem [#allocation6], %s289
        %p291 = pneg %p72
        %p292 = pneg %p69
        %s293 = sand.u32 %s25, 1
        %s294 = scalar_lea.sflag [#allocation7], %s293
        %s295 = sand.u32 %s85, 1
        %s296 = smul.addr %s295, 8
        %s297 = scalar_lea.vmem [#allocation8], %s296
        %p298 = pneg %p98
        %p299 = pneg %p95
        %s300 = sand.u32 %s111, 1
        %s301 = scalar_lea.sflag [#allocation10], %s300
        %s302 = sand.u32 %s111, 1
        %s303 = smul.addr %s302, 8
        %s304 = scalar_lea.vmem [#allocation9], %s303
        %p305 = pneg %p124
        %p306 = pneg %p121
        %p307 = pneg %p145
        %p308 = pneg %p142
        %p309 = scmp.eq.s32.totalorder %s25, 0
        // Predicated region
        $region53: #{tpu_custom_call.1} parent=35 // pred_check
          %p310 = pneg %p309
        $region54: #{tpu_custom_call.1} parent=35 // pred_check_branch
          %312 = sbr.rel (%p310) target = $region56
        $region55: #{tpu_custom_call.1} parent=35 // pred_region
          %313 = vst [vmem:[#allocation2] sm:$0xff] 0.0
        $region56: #{tpu_custom_call.1} parent=35 // pred_fallthru
          _
        %v314 = vld [vmem:[%s247] sm:$0xff]
        %v315 = vld [vmem:[%s265] sm:$0xff]
        %v316 = vsub.f32 %v314, %v315
        %v317 = vld [vmem:[%s256] sm:$0xff]
        %v318 = vld [vmem:[%s274] sm:$0xff]
        %v319 = vsub.f32 %v317, %v318
        %v320 = vld [vmem:[#allocation2] sm:$0xff]
        %v321 = vmul.f32 %v316, %v316
        %v322 = vmul.f32 %v319, %v319
        %v323 = vadd.f32 %v321, %v322
        %v324 = vadd.f32 %v320, %v323
        %325 = vst [vmem:[#allocation2] sm:$0xff] %v324
        %p326 = scmp.eq.s32.totalorder %s25, 3
        // Predicated region
        $region57: #{tpu_custom_call.1} parent=35 // pred_check
          %p327 = pneg %p326
        $region58: #{tpu_custom_call.1} parent=35 // pred_check_branch
          %329 = sbr.rel (%p327) target = $region60
        $region59: #{tpu_custom_call.1} parent=35 // pred_region
          %v330 = vld [vmem:[#allocation2] sm:$0xff]
          %331 = vadd.xlane.f32.xlu0 %v330
          %v332 = vpop.xlane.xlu0 %331
          %v333 = vrot.slane %v332, 4
          %v334 = vadd.f32 %v332, %v333
          %v335 = vrot.slane %v334, 2
          %v336 = vadd.f32 %v334, %v335
          %v337 = vrot.slane %v336, 1
          %v338 = vadd.f32 %v336, %v337
          %s339 = vtos %v338
          %s340 = smul.f32 %s339, 0.000125
          %s341 = scalar_lea.smem [#allocation11], 0
          %342 = sst [smem:[%s341]] %s340
        $region60: #{tpu_custom_call.1} parent=35 // pred_fallthru
          _
        // Predicated region
        $region61: #{tpu_custom_call.1} parent=35 // pred_check
          %p343 = pneg %p142
        $region62: #{tpu_custom_call.1} parent=35 // pred_check_branch
          %345 = sbr.rel (%p343) target = $region64
        $region63: #{tpu_custom_call.1} parent=35 // pred_region
          %s347 = ssub.s32 16, 16
          %348 = vsyncadd [#allocation5], %s347
          %351 = dma.smem_to_hbm [#allocation11], 16, %s4, [#allocation5]
        $region64: #{tpu_custom_call.1} parent=35 // pred_fallthru
          _
        // Predicated region
        $region65: #{tpu_custom_call.1} parent=35 // pred_check
          %p352 = pneg %p142
        $region66: #{tpu_custom_call.1} parent=35 // pred_check_branch
          %354 = sbr.rel (%p352) target = $region68
        $region67: #{tpu_custom_call.1} parent=35 // pred_region
          %355 = dma.done [#allocation5], 16
        $region68: #{tpu_custom_call.1} parent=35 // pred_fallthru
          _
        %356 = sfence
      $region36: #{tpu_custom_call.1} parent=5 // pred_fallthru
        _
      %p357 = scmp.le.s32.totalorder 2, %s20
      // Predicated region
      $region69: #{tpu_custom_call.1} parent=5 // pred_check
        %p358 = pneg %p357
      $region70: #{tpu_custom_call.1} parent=5 // pred_check_branch
        %360 = sbr.rel (%p358) target = $region72
      $region71: #{tpu_custom_call.1} parent=5 // pred_region
        %s361 = ssub.s32 %s20, 2
      $region72: #{tpu_custom_call.1} parent=5 // pred_fallthru
        _
    $region6: #{tpu_custom_call.1} parent=1 // loop_footer
      %s24 = sadd.s32 1, %s20
    $region7: #{tpu_custom_call.1} parent=1 // loop_footer_branch
      %19 = sbr.rel target = $region3
    $region8: #{tpu_custom_call.1} parent=1 // loop_exit
      _
    %362 = vsyncpa [#allocation4], 1
    %s363 = scalar_lea.sflag [#allocation4], 1
    %364 = vsyncpa %s363, 1
    %365 = vsyncpa [#allocation7], 1
    %s366 = scalar_lea.sflag [#allocation7], 1
    %367 = vsyncpa %s366, 1
    %368 = vsyncpa [#allocation10], 1
    %s369 = scalar_lea.sflag [#allocation10], 1
    %370 = vsyncpa %s369, 1
    %371 = vsyncpa [#allocation5], 1
    %s372 = scalar_lea.sflag [#allocation5], 1
    %373 = vsyncpa %s372, 1

</llo_original>
